<compile_context>
chip_gen: v6e
topology: v6e:2x2x1
jax: 0.10.0
libtpu: 0.0.40
codegen_flags: <defaults>
</compile_context>

<pallas_src>
import jax
import jax.numpy as jnp
from jax.experimental import pallas as pl
from jax.experimental.pallas import tpu as pltpu

NUM_NEURONS = 3
OUTPUT_RANGE = 10
_OP_WEIGHTS = (0.3, 0.5, 0.2)          # fixed-operator ("hands") weights
_LANE = 128                            # TPU lane width
_MAX_BLOCK_B = 1024                    # lane-dense batch tile per grid step


def _fused_agent_kernel(w_ref, b_ref, x_ref, acts_ref, action_ref):
    """sigmoid(x*w + b) per neuron, plus the fused fixed operator.

    w_ref, b_ref : (NUM_NEURONS,)      f32 SMEM  — nn.Linear(1, N) params
    x_ref        : (1, TB)             f32 VMEM  — lane-dense batch of scalars
    acts_ref     : (NUM_NEURONS, TB)   f32 VMEM  — neuron activations
    action_ref   : (1, TB)             i32 VMEM  — apply_fixed_operator output
    """
    x = x_ref[...]                               # (1, TB)
    acc = jnp.zeros_like(x)                      # fixed-operator weighted sum
    # Static 3-way unroll: scalar SMEM read + VPU broadcast-FMA + EUP sigmoid.
    for n in range(NUM_NEURONS):
        a = jax.nn.sigmoid(x * w_ref[n] + b_ref[n])      # (1, TB) f32
        acts_ref[pl.ds(n, 1), :] = a                     # lane-dense row store
        acc = acc + jnp.float32(_OP_WEIGHTS[n]) * a
    scaled = jnp.round(acc * jnp.float32(OUTPUT_RANGE - 1))   # half-to-even,
    action_ref[...] = jnp.clip(                                # same as torch
        scaled, 0.0, float(OUTPUT_RANGE - 1)
    ).astype(jnp.int32)


def internal_motivation_forward(desired_outputs, weight, bias):
    """Batched forward pass + fused fixed operator.

    desired_outputs: scalar or (B,) array of "desired output" scalars.
    weight: (NUM_NEURONS, 1) or (NUM_NEURONS,)  — nn.Linear(1, N) weight.
    bias:   (NUM_NEURONS,)                      — nn.Linear(1, N) bias.

    Returns (neuron_activations, actions):
      scalar input : acts (NUM_NEURONS,) f32  — identical to the module's
                     forward() output — and a scalar int32 action.
      batch input  : acts (B, NUM_NEURONS) f32 and actions (B,) int32.
    """
    x = jnp.asarray(desired_outputs, jnp.float32)
    scalar_input = (x.ndim == 0)
    x = jnp.atleast_1d(x).reshape(-1)
    batch = x.shape[0]

    # Pad the batch to a lane-dense width (multiple of 128; multiple of the
    # block size if we need a grid). Padding lanes compute garbage we slice off.
    b_pad = max(_LANE, -(-batch // _LANE) * _LANE)
    use_grid = b_pad > _MAX_BLOCK_B
    if use_grid:
        b_pad = -(-b_pad // _MAX_BLOCK_B) * _MAX_BLOCK_B
    x_padded = jnp.pad(x[None, :], ((0, 0), (0, b_pad - batch)))   # (1, b_pad)

    # Tiny param vectors -> SMEM. (Under jit these reshapes fuse away; for a
    # hot eager loop, pre-flatten them once at parameter-init time instead.)
    w_vec = jnp.asarray(weight, jnp.float32).reshape(NUM_NEURONS)
    b_vec = jnp.asarray(bias, jnp.float32).reshape(NUM_NEURONS)

    out_shapes = (
        jax.ShapeDtypeStruct((NUM_NEURONS, b_pad), jnp.float32),
        jax.ShapeDtypeStruct((1, b_pad), jnp.int32),
    )
    smem_spec = pl.BlockSpec(memory_space=pltpu.MemorySpace.SMEM)

    if not use_grid:
        # Grid-less: one DMA-in / compute / DMA-out, no trivial pipeline step.
        acts, actions = pl.pallas_call(
            _fused_agent_kernel,
            out_shape=out_shapes,
            in_specs=[
                smem_spec,                                          # weight
                smem_spec,                                          # bias
                pl.BlockSpec(memory_space=pltpu.MemorySpace.VMEM),  # x
            ],
            out_specs=(
                pl.BlockSpec(memory_space=pltpu.MemorySpace.VMEM),  # acts
                pl.BlockSpec(memory_space=pltpu.MemorySpace.VMEM),  # actions
            ),
        )(w_vec, b_vec, x_padded)
    else:
        # Large batch: tile the lane axis; "parallel" lets v7x's 2 TCs split it.
        tb = _MAX_BLOCK_B
        acts, actions = pl.pallas_call(
            _fused_agent_kernel,
            out_shape=out_shapes,
            grid=(b_pad // tb,),
            in_specs=[
                smem_spec,
                smem_spec,
                pl.BlockSpec((1, tb), lambda i: (0, i)),
            ],
            out_specs=(
                pl.BlockSpec((NUM_NEURONS, tb), lambda i: (0, i)),
                pl.BlockSpec((1, tb), lambda i: (0, i)),
            ),
            compiler_params=pltpu.CompilerParams(
                dimension_semantics=("parallel",)
            ),
        )(w_vec, b_vec, x_padded)

    acts_bn = acts[:, :batch].T      # (B, NUM_NEURONS)
    actions_b = actions[0, :batch]   # (B,) int32
    if scalar_input:
        return acts_bn[0], actions_b[0]
    return acts_bn, actions_b


def _reference(x, weight, bias):
    """Pure-JAX reference of the same math (module forward + fixed operator)."""
    x = jnp.atleast_1d(jnp.asarray(x, jnp.float32))
    w = jnp.asarray(weight, jnp.float32).reshape(NUM_NEURONS)
    b = jnp.asarray(bias, jnp.float32).reshape(NUM_NEURONS)
    acts = jax.nn.sigmoid(x[:, None] * w[None, :] + b[None, :])   # (B, N)
    return acts


def _reference_operator(acts):
    """Fixed operator on given activations, same op order as the kernel."""
    ws = (acts[..., 0] * 0.3 + acts[..., 1] * 0.5) + acts[..., 2] * 0.2
    out = jnp.round(ws * (OUTPUT_RANGE - 1))
    return jnp.clip(out, 0.0, float(OUTPUT_RANGE - 1)).astype(jnp.int32)


if __name__ == "__main__":
    key = jax.random.PRNGKey(0)
    k_w, k_b, k_x = jax.random.split(key, 3)

    # nn.Linear(1, 3) init: U(-bound, bound) with bound = 1/sqrt(in_features)=1.
    weight = jax.random.uniform(
        k_w, (NUM_NEURONS, 1), jnp.float32, minval=-1.0, maxval=1.0
    )
    bias = jax.random.uniform(
        k_b, (NUM_NEURONS,), jnp.float32, minval=-1.0, maxval=1.0
    )

    fwd = jax.jit(internal_motivation_forward)

    # 1) Single scalar input — matches the PyTorch module's forward() exactly.
    desired_scalar = jnp.float32(7.0)
    acts_s, action_s = jax.block_until_ready(fwd(desired_scalar, weight, bias))
    ref_s = _reference(desired_scalar, weight, bias)[0]
    assert acts_s.shape == (NUM_NEURONS,)
    assert jnp.allclose(acts_s, ref_s, rtol=1e-5, atol=1e-5), (acts_s, ref_s)
    assert bool(jnp.all(action_s == _reference_operator(acts_s)))

    # 2) Small batch — one launch amortizes dispatch cost over B agent steps.
    B = 8
    desired_batch = jax.random.uniform(
        k_x, (B,), jnp.float32, minval=0.0, maxval=9.0
    )
    acts_b, actions_b = jax.block_until_ready(fwd(desired_batch, weight, bias))
    ref_b = _reference(desired_batch, weight, bias)
    assert acts_b.shape == (B, NUM_NEURONS) and actions_b.shape == (B,)
    assert jnp.allclose(acts_b, ref_b, rtol=1e-5, atol=1e-5)
    assert bool(jnp.all(actions_b == _reference_operator(acts_b)))

    # 3) Larger batch — exercises the tiled "parallel" grid path.
    B2 = 2000
    desired_big = jax.random.uniform(
        jax.random.PRNGKey(1), (B2,), jnp.float32, minval=0.0, maxval=9.0
    )
    acts_g, actions_g = jax.block_until_ready(fwd(desired_big, weight, bias))
    ref_g = _reference(desired_big, weight, bias)
    assert acts_g.shape == (B2, NUM_NEURONS) and actions_g.shape == (B2,)
    assert jnp.allclose(acts_g, ref_g, rtol=1e-5, atol=1e-5)
    assert bool(jnp.all(actions_g == _reference_operator(acts_g)))

    print("KERNEL_OK")
</pallas_src>

<mosaic_0001>
module attributes {stable_mosaic.version = 11 : i64} {
  func.func @_fused_agent_kernel(%arg0: memref<3xf32, #tpu.memory_space<smem>>, %arg1: memref<3xf32, #tpu.memory_space<smem>>, %arg2: memref<1x128xf32, #tpu.memory_space<vmem>>, %arg3: memref<3x128xf32, #tpu.memory_space<vmem>>, %arg4: memref<1x128xi32, #tpu.memory_space<vmem>>) attributes {dimension_semantics = [], scalar_prefetch = 0 : i64, scratch_operands = 0 : i64, tpu.core_type = #tpu.core_type<tc>} {
    %c0 = arith.constant 0 : index
    %c0_0 = arith.constant 0 : index
    %0 = vector.load %arg2[%c0, %c0_0] : memref<1x128xf32, #tpu.memory_space<vmem>>, vector<1x128xf32>
    %cst = arith.constant 0.000000e+00 : f32
    %1 = vector.broadcast %cst : f32 to vector<1x128xf32>
    %c0_1 = arith.constant 0 : index
    %2 = memref.load %arg0[%c0_1] : memref<3xf32, #tpu.memory_space<smem>>
    %3 = vector.broadcast %2 : f32 to vector<1x128xf32>
    %4 = arith.mulf %0, %3 : vector<1x128xf32>
    %c0_2 = arith.constant 0 : index
    %5 = memref.load %arg1[%c0_2] : memref<3xf32, #tpu.memory_space<smem>>
    %6 = vector.broadcast %5 : f32 to vector<1x128xf32>
    %7 = arith.addf %4, %6 : vector<1x128xf32>
    %8 = arith.negf %7 : vector<1x128xf32>
    %9 = math.exp %8 : vector<1x128xf32>
    %cst_3 = arith.constant 1.000000e+00 : f32
    %10 = vector.broadcast %cst_3 : f32 to vector<1x128xf32>
    %11 = arith.addf %10, %9 : vector<1x128xf32>
    %12 = arith.divf %10, %11 : vector<1x128xf32>
    %c0_4 = arith.constant 0 : index
    %c0_5 = arith.constant 0 : index
    %13 = vector.load %arg3[%c0_4, %c0_5] : memref<3x128xf32, #tpu.memory_space<vmem>>, vector<1x128xf32>
    tpu.vector_store %arg3[%c0_4, %c0_5], %12 {strides = array<i32>} : memref<3x128xf32, #tpu.memory_space<vmem>>, vector<1x128xf32>,
    %cst_6 = arith.constant 3.000000e-01 : f32
    %14 = vector.broadcast %cst_6 : f32 to vector<1x128xf32>
    %15 = arith.mulf %14, %12 : vector<1x128xf32>
    %16 = arith.addf %1, %15 : vector<1x128xf32>
    %c1 = arith.constant 1 : index
    %17 = memref.load %arg0[%c1] : memref<3xf32, #tpu.memory_space<smem>>
    %18 = vector.broadcast %17 : f32 to vector<1x128xf32>
    %19 = arith.mulf %0, %18 : vector<1x128xf32>
    %c1_7 = arith.constant 1 : index
    %20 = memref.load %arg1[%c1_7] : memref<3xf32, #tpu.memory_space<smem>>
    %21 = vector.broadcast %20 : f32 to vector<1x128xf32>
    %22 = arith.addf %19, %21 : vector<1x128xf32>
    %23 = arith.negf %22 : vector<1x128xf32>
    %24 = math.exp %23 : vector<1x128xf32>
    %cst_8 = arith.constant 1.000000e+00 : f32
    %25 = vector.broadcast %cst_8 : f32 to vector<1x128xf32>
    %26 = arith.addf %25, %24 : vector<1x128xf32>
    %27 = arith.divf %25, %26 : vector<1x128xf32>
    %c1_9 = arith.constant 1 : index
    %c0_10 = arith.constant 0 : index
    %28 = vector.load %arg3[%c1_9, %c0_10] : memref<3x128xf32, #tpu.memory_space<vmem>>, vector<1x128xf32>
    tpu.vector_store %arg3[%c1_9, %c0_10], %27 {strides = array<i32>} : memref<3x128xf32, #tpu.memory_space<vmem>>, vector<1x128xf32>,
    %cst_11 = arith.constant 5.000000e-01 : f32
    %29 = vector.broadcast %cst_11 : f32 to vector<1x128xf32>
    %30 = arith.mulf %29, %27 : vector<1x128xf32>
    %31 = arith.addf %16, %30 : vector<1x128xf32>
    %c2 = arith.constant 2 : index
    %32 = memref.load %arg0[%c2] : memref<3xf32, #tpu.memory_space<smem>>
    %33 = vector.broadcast %32 : f32 to vector<1x128xf32>
    %34 = arith.mulf %0, %33 : vector<1x128xf32>
    %c2_12 = arith.constant 2 : index
    %35 = memref.load %arg1[%c2_12] : memref<3xf32, #tpu.memory_space<smem>>
    %36 = vector.broadcast %35 : f32 to vector<1x128xf32>
    %37 = arith.addf %34, %36 : vector<1x128xf32>
    %38 = arith.negf %37 : vector<1x128xf32>
    %39 = math.exp %38 : vector<1x128xf32>
    %cst_13 = arith.constant 1.000000e+00 : f32
    %40 = vector.broadcast %cst_13 : f32 to vector<1x128xf32>
    %41 = arith.addf %40, %39 : vector<1x128xf32>
    %42 = arith.divf %40, %41 : vector<1x128xf32>
    %c2_14 = arith.constant 2 : index
    %c0_15 = arith.constant 0 : index
    %43 = vector.load %arg3[%c2_14, %c0_15] : memref<3x128xf32, #tpu.memory_space<vmem>>, vector<1x128xf32>
    tpu.vector_store %arg3[%c2_14, %c0_15], %42 {strides = array<i32>} : memref<3x128xf32, #tpu.memory_space<vmem>>, vector<1x128xf32>,
    %cst_16 = arith.constant 2.000000e-01 : f32
    %44 = vector.broadcast %cst_16 : f32 to vector<1x128xf32>
    %45 = arith.mulf %44, %42 : vector<1x128xf32>
    %46 = arith.addf %31, %45 : vector<1x128xf32>
    %cst_17 = arith.constant 9.000000e+00 : f32
    %47 = vector.broadcast %cst_17 : f32 to vector<1x128xf32>
    %48 = arith.mulf %46, %47 : vector<1x128xf32>
    %49 = math.roundeven %48 : vector<1x128xf32>
    %cst_18 = arith.constant 0.000000e+00 : f32
    %cst_19 = arith.constant 9.000000e+00 : f32
    %50 = vector.broadcast %cst_18 : f32 to vector<1x128xf32>
    %51 = arith.maximumf %50, %49 : vector<1x128xf32>
    %52 = vector.broadcast %cst_19 : f32 to vector<1x128xf32>
    %53 = arith.minimumf %52, %51 : vector<1x128xf32>
    %54 = arith.fptosi %53 : vector<1x128xf32> to vector<1x128xi32>
    %c0_20 = arith.constant 0 : index
    %c0_21 = arith.constant 0 : index
    %55 = vector.load %arg4[%c0_20, %c0_21] : memref<1x128xi32, #tpu.memory_space<vmem>>, vector<1x128xi32>
    tpu.vector_store %arg4[%c0_20, %c0_21], %54 {strides = array<i32>} : memref<1x128xi32, #tpu.memory_space<vmem>>, vector<1x128xi32>,
    return
  }
}

</mosaic_0001>

<llo_original>
// kernel: internal_motivation_forward.1
$region0: #{internal_motivation_forward.1}
  #allocation0 [shape = 'u32[]', space=smem, size = 0x4, offset = 0x4, fixed_abs, tag = 'smem constant byte address 0x4 - core index']
  #allocation1 [shape = 'u32[144,128]{1,0:T(1,128)}', space=vmem, size = 0x12000, scoped, tag = 'internal scratch']
  %s0 = inlined_call_operand.vmem [shape: f32[3], index: 0, kind: input, shape index: {}]
  %s1 = inlined_call_operand.vmem [shape: f32[3], index: 1, kind: input, shape index: {}]
  %s2 = inlined_call_operand.vmem [shape: f32[1,128], index: 2, kind: input, shape index: {}]
  %s3 = inlined_call_operand.vmem [shape: f32[3,128], index: 3, kind: output, shape index: {0}]
  %s4 = inlined_call_operand.hbm [shape: s32[1,128], index: 4, kind: output, shape index: {1}]
  %5 = xla_tuple %s3, %s4
  %s6 = sld [smem:[#allocation0]]
  $region38: #{internal_motivation_forward.1} parent=0
    _
  %s8 = ssub.s32 1, %s6
  %s9 = scalar_select 0, %s8, %s6
  $region1: #{internal_motivation_forward.1} parent=0
    #allocation2 [shape = 'u8[512]{0}', space=smem, size = 0x200, scoped, tag = 'input window, operand 0, single buffered']
    #allocation3 [shape = 's32[1]{0}', space=sflag, size = 0x4, scoped, tag = 'scoped memory for internal_motivation_forward.1']
    #allocation4 [shape = 's32[1]{0}', space=sflag, size = 0x4, scoped, tag = 'scoped memory for internal_motivation_forward.1']
    #allocation5 [shape = 'u8[512]{0}', space=smem, size = 0x200, scoped, tag = 'input window, operand 1, single buffered']
    #allocation6 [shape = 's32[1]{0}', space=sflag, size = 0x4, scoped, tag = 'scoped memory for internal_motivation_forward.1']
    #allocation7 [shape = 'u8[512]{0}', space=vmem, size = 0x400, scoped, tag = 'output window, operand 1, single buffered']
    %10 = vsyncpa [#allocation4], 0
    %11 = vsyncpa [#allocation6], 0
    %12 = vsyncpa [#allocation3], 0
    // Predicated region
    $region2: #{internal_motivation_forward.1} parent=1 // pred_check
      _
    $region3: #{internal_motivation_forward.1} parent=1 // pred_check_branch
      %14 = sbr.rel (0) target = $region5
    $region4: #{internal_motivation_forward.1} parent=1 // pred_region
      %s16 = ssub.s32 16, 16
      %17 = vsyncadd [#allocation4], %s16
      %s19 = sshll.u32 %s0, 4
      %s20 = int_to_ptr.vmem [resolvable:$true] %s19
      %22 = dma.vmem_to_smem %s20, 16, [#allocation2], [#allocation4]
    $region5: #{internal_motivation_forward.1} parent=1 // pred_fallthru
      _
    // Predicated region
    $region6: #{internal_motivation_forward.1} parent=1 // pred_check
      _
    $region7: #{internal_motivation_forward.1} parent=1 // pred_check_branch
      %24 = sbr.rel (0) target = $region9
    $region8: #{internal_motivation_forward.1} parent=1 // pred_region
      %s26 = ssub.s32 16, 16
      %27 = vsyncadd [#allocation6], %s26
      %s29 = sshll.u32 %s1, 4
      %s30 = int_to_ptr.vmem [resolvable:$true] %s29
      %32 = dma.vmem_to_smem %s30, 16, [#allocation5], [#allocation6]
    $region9: #{internal_motivation_forward.1} parent=1 // pred_fallthru
      _
    // Predicated region
    $region10: #{internal_motivation_forward.1} parent=1 // pred_check
      _
    $region11: #{internal_motivation_forward.1} parent=1 // pred_check_branch
      %34 = sbr.rel (0) target = $region13
    $region12: #{internal_motivation_forward.1} parent=1 // pred_region
      _
    $region13: #{internal_motivation_forward.1} parent=1 // pred_fallthru
      _
    // Predicated region
    $region14: #{internal_motivation_forward.1} parent=1 // pred_check
      _
    $region15: #{internal_motivation_forward.1} parent=1 // pred_check_branch
      %36 = sbr.rel (0) target = $region17
    $region16: #{internal_motivation_forward.1} parent=1 // pred_region
      %37 = dma.done [#allocation4], 16
    $region17: #{internal_motivation_forward.1} parent=1 // pred_fallthru
      _
    // Predicated region
    $region18: #{internal_motivation_forward.1} parent=1 // pred_check
      _
    $region19: #{internal_motivation_forward.1} parent=1 // pred_check_branch
      %39 = sbr.rel (0) target = $region21
    $region20: #{internal_motivation_forward.1} parent=1 // pred_region
      %40 = dma.done [#allocation6], 16
    $region21: #{internal_motivation_forward.1} parent=1 // pred_fallthru
      _
    %41 = sfence
    %v42 = vld [vmem:[%s2] sm:$0x1]
    %s43 = sld [smem:[#allocation2]]
    %v44 = vstv %s43
    %v45 = vmul.f32 %v42, %v44
    %s46 = sld [smem:[#allocation5]]
    %v47 = vstv %s46
    %v48 = vadd.f32 %v45, %v47
    %v49 = vxor.u32 %v48, 2147483648
    %v50 = vmul.f32 %v49, 1.442695
    %v51 = vpow.pop %v50
    %v52 = vadd.f32 %v51, 1.0
    %v53 = vrcp.pop %v52
    %v54 = vmul.f32 1.0, %v53
    %55 = vst [vmem:[%s3] sm:$0x1] %v54
    %v56 = vmul.f32 %v54, 0.3
    %v57 = vadd.f32 %v56, 0.0
    %s58 = sld [smem:[#allocation2 + $0x1]]
    %v59 = vstv %s58
    %v60 = vmul.f32 %v42, %v59
    %s61 = sld [smem:[#allocation5 + $0x1]]
    %v62 = vstv %s61
    %v63 = vadd.f32 %v60, %v62
    %v64 = vxor.u32 %v63, 2147483648
    %v65 = vmul.f32 %v64, 1.442695
    %v66 = vpow.pop %v65
    %v67 = vadd.f32 %v66, 1.0
    %v68 = vrcp.pop %v67
    %v69 = vmul.f32 1.0, %v68
    %70 = vst [vmem:[%s3 + $0x1] sm:$0x1] %v69
    %v71 = vmul.f32 %v69, 0.5
    %v72 = vadd.f32 %v57, %v71
    %s73 = sld [smem:[#allocation2 + $0x2]]
    %v74 = vstv %s73
    %v75 = vmul.f32 %v42, %v74
    %s76 = sld [smem:[#allocation5 + $0x2]]
    %v77 = vstv %s76
    %v78 = vadd.f32 %v75, %v77
    %v79 = vxor.u32 %v78, 2147483648
    %v80 = vmul.f32 %v79, 1.442695
    %v81 = vpow.pop %v80
    %v82 = vadd.f32 %v81, 1.0
    %v83 = vrcp.pop %v82
    %v84 = vmul.f32 1.0, %v83
    %85 = vst [vmem:[%s3 + $0x2] sm:$0x1] %v84
    %v86 = vmul.f32 %v84, 0.2
    %v87 = vadd.f32 %v72, %v86
    %v88 = vmul.f32 %v87, 9.0
    %v89 = vround.ne.pseudo %v88
    %v90 = vmax.f32 %v89, 0.0
    %v91 = vmin.f32 %v90, 9.0
    %v92 = vcvt.f32.s32.to.zero.pseudo %v91
    %93 = vst [vmem:[#allocation7] sm:$0x1] %v92
    // Predicated region
    $region22: #{internal_motivation_forward.1} parent=1 // pred_check
      _
    $region23: #{internal_motivation_forward.1} parent=1 // pred_check_branch
      %95 = sbr.rel (0) target = $region25
    $region24: #{internal_motivation_forward.1} parent=1 // pred_region
      _
    $region25: #{internal_motivation_forward.1} parent=1 // pred_fallthru
      _
    // Predicated region
    $region26: #{internal_motivation_forward.1} parent=1 // pred_check
      _
    $region27: #{internal_motivation_forward.1} parent=1 // pred_check_branch
      %97 = sbr.rel (0) target = $region29
    $region28: #{internal_motivation_forward.1} parent=1 // pred_region
      %s99 = ssub.s32 16, 16
      %100 = vsyncadd [#allocation3], %s99
      %s102 = sshll.u32 [#allocation7], 4
      %s103 = int_to_ptr.vmem [resolvable:$true] %s102
      %105 = dma.vmem_to_hbm [thread:$0]  %s103, 16, %s4, [#allocation3]
    $region29: #{internal_motivation_forward.1} parent=1 // pred_fallthru
      _
    // Predicated region
    $region30: #{internal_motivation_forward.1} parent=1 // pred_check
      _
    $region31: #{internal_motivation_forward.1} parent=1 // pred_check_branch
      %107 = sbr.rel (0) target = $region33
    $region32: #{internal_motivation_forward.1} parent=1 // pred_region
      _
    $region33: #{internal_motivation_forward.1} parent=1 // pred_fallthru
      _
    // Predicated region
    $region34: #{internal_motivation_forward.1} parent=1 // pred_check
      _
    $region35: #{internal_motivation_forward.1} parent=1 // pred_check_branch
      %109 = sbr.rel (0) target = $region37
    $region36: #{internal_motivation_forward.1} parent=1 // pred_region
      %110 = dma.done [#allocation3], 16
    $region37: #{internal_motivation_forward.1} parent=1 // pred_fallthru
      _
    %111 = vsyncpa [#allocation3], 1
    %112 = vsyncpa [#allocation4], 1
    %113 = vsyncpa [#allocation6], 1

</llo_original>
